<compile_context>
chip_gen: v5e
topology: v5e:2x2
jax: 0.10.0
libtpu: 0.0.40
codegen_flags: <defaults>
</compile_context>

<pallas_src>
import functools

import jax
import jax.numpy as jnp
from jax.experimental import pallas as pl
from jax.experimental.pallas import tpu as pltpu

LANES = 128


def _focal_kernel(pred_ref, gt_ref, loss_ref, cnt_ref, *,
                  block_rows, valid_rows, ragged):
    """Accumulates lane-wise [sum(pos_loss + neg_loss), sum(pos_inds)]."""
    i = pl.program_id(0)

    @pl.when(i == 0)
    def _():
        loss_ref[...] = jnp.zeros_like(loss_ref)
        cnt_ref[...] = jnp.zeros_like(cnt_ref)

    p = pred_ref[...].astype(jnp.float32)
    g = gt_ref[...].astype(jnp.float32)

    is_pos = g == 1.0
    is_neg = g < 1.0

    if ragged:
        # Mask rows of the (partial) final block that lie past the real data.
        row = jax.lax.broadcasted_iota(jnp.int32, p.shape, 0)
        bound = jnp.minimum(valid_rows - i * block_rows, block_rows)
        valid = row < bound
        is_pos = jnp.logical_and(is_pos, valid)
        is_neg = jnp.logical_and(is_neg, valid)

    one_m_p = 1.0 - p
    # Single transcendental per element: log(p) for positives, log(1-p) else.
    logq = jnp.log(jnp.where(is_pos, p, one_m_p))

    one_m_g = 1.0 - g
    g2 = one_m_g * one_m_g
    # pos weight: (1-p)^2 ; neg weight: p^2 * (1-g)^4
    w = jnp.where(is_pos, one_m_p * one_m_p, (p * p) * (g2 * g2))

    # pos and neg are disjoint, so a single loss accumulator suffices
    # (when num_pos == 0 the pos part is exactly 0, matching the reference).
    contrib = jnp.where(jnp.logical_or(is_pos, is_neg), logq * w, 0.0)
    cnt = jnp.where(is_pos, 1.0, 0.0)

    # Sublane-only reduction per step; cross-lane reduce deferred to wrapper.
    loss_ref[...] += jnp.sum(contrib, axis=0, keepdims=True)
    cnt_ref[...] += jnp.sum(cnt, axis=0, keepdims=True)


@functools.partial(jax.jit, static_argnames=("block_rows",))
def focal_loss(pred, gt, block_rows=2048):
    """CornerNet focal loss. pred, gt: (B, C, H, W), pred in (0, 1)."""
    assert pred.shape == gt.shape
    n = pred.size

    # Keep bf16/f32 in HBM as-is (cast happens in-kernel); others -> f32.
    if pred.dtype not in (jnp.float32, jnp.bfloat16):
        pred = pred.astype(jnp.float32)
    if gt.dtype not in (jnp.float32, jnp.bfloat16):
        gt = gt.astype(jnp.float32)

    pred_flat = pred.reshape(-1)
    gt_flat = gt.reshape(-1)

    # Only pad the (rare) ragged tail to a lane multiple. gt pad = 2.0 makes
    # both eq(1) and lt(1) false, so padding contributes nothing.
    rem = n % LANES
    if rem != 0:
        pad = LANES - rem
        pred_flat = jnp.pad(pred_flat, (0, pad), constant_values=0.5)
        gt_flat = jnp.pad(gt_flat, (0, pad), constant_values=2.0)

    rows = pred_flat.size // LANES
    pred2d = pred_flat.reshape(rows, LANES)
    gt2d = gt_flat.reshape(rows, LANES)

    # Block rows: as large as possible (<= block_rows); must be a multiple of 8
    # or equal to the full row extent.
    blk = min(block_rows, rows)
    if blk < rows and blk % 8 != 0:
        blk = max(8, (blk // 8) * 8)
    grid = (pl.cdiv(rows, blk),)
    ragged = (rows % blk) != 0

    kernel = functools.partial(
        _focal_kernel, block_rows=blk, valid_rows=rows, ragged=ragged)

    loss_lanes, cnt_lanes = pl.pallas_call(
        kernel,
        out_shape=(
            jax.ShapeDtypeStruct((1, LANES), jnp.float32),
            jax.ShapeDtypeStruct((1, LANES), jnp.float32),
        ),
        grid_spec=pltpu.PrefetchScalarGridSpec(
            num_scalar_prefetch=0,
            grid=grid,
            in_specs=[
                pl.BlockSpec((blk, LANES), lambda i: (i, 0)),
                pl.BlockSpec((blk, LANES), lambda i: (i, 0)),
            ],
            out_specs=[
                pl.BlockSpec((1, LANES), lambda i: (0, 0)),
                pl.BlockSpec((1, LANES), lambda i: (0, 0)),
            ],
        ),
        compiler_params=pltpu.CompilerParams(
            dimension_semantics=("arbitrary",)),
    )(pred2d, gt2d)

    total = jnp.sum(loss_lanes)
    num_pos = jnp.sum(cnt_lanes)
    # if num_pos == 0: loss = -neg_loss (pos part is exactly 0)
    # else:            loss = -(pos_loss + neg_loss) / num_pos
    return jnp.where(num_pos == 0.0, -total,
                     -total / jnp.maximum(num_pos, 1.0))


def _reference_focal_loss(pred, gt):
    pred = pred.astype(jnp.float32)
    gt = gt.astype(jnp.float32)
    pos_inds = (gt == 1.0).astype(jnp.float32)
    neg_inds = (gt < 1.0).astype(jnp.float32)
    neg_weights = (1.0 - gt) ** 4
    pos_loss = jnp.sum(jnp.log(pred) * (1.0 - pred) ** 2 * pos_inds)
    neg_loss = jnp.sum(jnp.log(1.0 - pred) * pred ** 2 * neg_weights * neg_inds)
    num_pos = jnp.sum(pos_inds)
    return jnp.where(num_pos == 0.0, -neg_loss,
                     -(pos_loss + neg_loss) / jnp.maximum(num_pos, 1.0))


if __name__ == "__main__":
    key = jax.random.PRNGKey(0)
    k1, k2, k3 = jax.random.split(key, 3)

    B, C, H, W = 2, 4, 16, 16
    # pred: strictly in (0, 1) (post-sigmoid heatmap)
    pred = jax.nn.sigmoid(jax.random.normal(k1, (B, C, H, W), dtype=jnp.float32))
    pred = jnp.clip(pred, 1e-4, 1.0 - 1e-4)
    # gt: gaussian-ish heatmap in [0, 1) plus a few exact 1.0 peaks
    gt = jax.random.uniform(k2, (B, C, H, W), dtype=jnp.float32) * 0.9
    peak_mask = jax.random.uniform(k3, (B, C, H, W)) > 0.98
    gt = jnp.where(peak_mask, 1.0, gt)

    out = focal_loss(pred, gt)
    out = jax.block_until_ready(out)

    ref = _reference_focal_loss(pred, gt)
    assert jnp.allclose(out, ref, rtol=1e-5, atol=1e-5), (out, ref)

    print("KERNEL_OK")
</pallas_src>

<mosaic_0001>
module attributes {stable_mosaic.version = 11 : i64} {
  func.func @_focal_kernel(%arg0: i32, %arg1: memref<16x128xf32, #tpu.memory_space<vmem>>, %arg2: memref<16x128xf32, #tpu.memory_space<vmem>>, %arg3: memref<1x128xf32, #tpu.memory_space<vmem>>, %arg4: memref<1x128xf32, #tpu.memory_space<vmem>>) attributes {dimension_semantics = [#tpu.dimension_semantics<arbitrary>], iteration_bounds = array<i64: 1>, scalar_prefetch = 0 : i64, scratch_operands = 0 : i64, tpu.core_type = #tpu.core_type<tc>, window_params = [{transform_indices = @transform_0, window_bounds = array<i64: 16, 128>}, {transform_indices = @transform_1, window_bounds = array<i64: 16, 128>}, {pipeline_mode = #tpu.pipeline_mode<synchronous>, transform_indices = @transform_2, window_bounds = array<i64: 1, 128>}, {pipeline_mode = #tpu.pipeline_mode<synchronous>, transform_indices = @transform_3, window_bounds = array<i64: 1, 128>}]} {
    %c0_i32 = arith.constant 0 : i32
    %0 = arith.cmpi eq, %arg0, %c0_i32 : i32
    %1 = arith.extui %0 : i1 to i32
    %c0_i32_0 = arith.constant 0 : i32
    %2 = arith.cmpi ne, %1, %c0_i32_0 : i32
    scf.if %2 {
      %cst_20 = arith.constant 0.000000e+00 : f32
      %38 = vector.broadcast %cst_20 : f32 to vector<1x128xf32>
      %c0_21 = arith.constant 0 : index
      %c0_22 = arith.constant 0 : index
      %39 = vector.load %arg3[%c0_21, %c0_22] : memref<1x128xf32, #tpu.memory_space<vmem>>, vector<1x128xf32>
      tpu.vector_store %arg3[%c0_21, %c0_22], %38 {strides = array<i32>} : memref<1x128xf32, #tpu.memory_space<vmem>>, vector<1x128xf32>,
      %cst_23 = arith.constant 0.000000e+00 : f32
      %40 = vector.broadcast %cst_23 : f32 to vector<1x128xf32>
      %c0_24 = arith.constant 0 : index
      %c0_25 = arith.constant 0 : index
      %41 = vector.load %arg4[%c0_24, %c0_25] : memref<1x128xf32, #tpu.memory_space<vmem>>, vector<1x128xf32>
      tpu.vector_store %arg4[%c0_24, %c0_25], %40 {strides = array<i32>} : memref<1x128xf32, #tpu.memory_space<vmem>>, vector<1x128xf32>,
    } else {
    }
    %c0 = arith.constant 0 : index
    %c0_1 = arith.constant 0 : index
    %3 = vector.load %arg1[%c0, %c0_1] : memref<16x128xf32, #tpu.memory_space<vmem>>, vector<16x128xf32>
    %c0_2 = arith.constant 0 : index
    %c0_3 = arith.constant 0 : index
    %4 = vector.load %arg2[%c0_2, %c0_3] : memref<16x128xf32, #tpu.memory_space<vmem>>, vector<16x128xf32>
    %cst = arith.constant 1.000000e+00 : f32
    %5 = vector.broadcast %cst : f32 to vector<16x128xf32>
    %6 = arith.cmpf oeq, %4, %5 : vector<16x128xf32>
    %cst_4 = arith.constant 1.000000e+00 : f32
    %7 = vector.broadcast %cst_4 : f32 to vector<16x128xf32>
    %8 = arith.cmpf olt, %4, %7 : vector<16x128xf32>
    %cst_5 = arith.constant 1.000000e+00 : f32
    %9 = vector.broadcast %cst_5 : f32 to vector<16x128xf32>
    %10 = arith.subf %9, %3 : vector<16x128xf32>
    %11 = arith.select %6, %3, %10 : vector<16x128xi1>, vector<16x128xf32>
    %12 = math.log %11 : vector<16x128xf32>
    %cst_6 = arith.constant 1.000000e+00 : f32
    %13 = vector.broadcast %cst_6 : f32 to vector<16x128xf32>
    %14 = arith.subf %13, %4 : vector<16x128xf32>
    %15 = arith.mulf %14, %14 : vector<16x128xf32>
    %16 = arith.mulf %10, %10 : vector<16x128xf32>
    %17 = arith.mulf %3, %3 : vector<16x128xf32>
    %18 = arith.mulf %15, %15 : vector<16x128xf32>
    %19 = arith.mulf %17, %18 : vector<16x128xf32>
    %20 = arith.select %6, %16, %19 : vector<16x128xi1>, vector<16x128xf32>
    %21 = arith.ori %6, %8 : vector<16x128xi1>
    %22 = arith.mulf %12, %20 : vector<16x128xf32>
    %cst_7 = arith.constant 0.000000e+00 : f32
    %23 = vector.broadcast %cst_7 : f32 to vector<16x128xf32>
    %24 = arith.select %21, %22, %23 : vector<16x128xi1>, vector<16x128xf32>
    %cst_8 = arith.constant 1.000000e+00 : f32
    %cst_9 = arith.constant 0.000000e+00 : f32
    %25 = vector.broadcast %cst_8 : f32 to vector<16x128xf32>
    %26 = vector.broadcast %cst_9 : f32 to vector<16x128xf32>
    %27 = arith.select %6, %25, %26 : vector<16x128xi1>, vector<16x128xf32>
    %c0_10 = arith.constant 0 : index
    %c0_11 = arith.constant 0 : index
    %28 = vector.load %arg3[%c0_10, %c0_11] : memref<1x128xf32, #tpu.memory_space<vmem>>, vector<1x128xf32>
    %cst_12 = arith.constant dense<0.000000e+00> : vector<128xf32>
    %29 = vector.multi_reduction <add>, %24, %cst_12 [0] : vector<16x128xf32> to vector<128xf32>
    %30 = vector.shape_cast %29 : vector<128xf32> to vector<1x128xf32>
    %31 = arith.addf %28, %30 : vector<1x128xf32>
    %c0_13 = arith.constant 0 : index
    %c0_14 = arith.constant 0 : index
    %32 = vector.load %arg3[%c0_13, %c0_14] : memref<1x128xf32, #tpu.memory_space<vmem>>, vector<1x128xf32>
    tpu.vector_store %arg3[%c0_13, %c0_14], %31 {strides = array<i32>} : memref<1x128xf32, #tpu.memory_space<vmem>>, vector<1x128xf32>,
    %c0_15 = arith.constant 0 : index
    %c0_16 = arith.constant 0 : index
    %33 = vector.load %arg4[%c0_15, %c0_16] : memref<1x128xf32, #tpu.memory_space<vmem>>, vector<1x128xf32>
    %cst_17 = arith.constant dense<0.000000e+00> : vector<128xf32>
    %34 = vector.multi_reduction <add>, %27, %cst_17 [0] : vector<16x128xf32> to vector<128xf32>
    %35 = vector.shape_cast %34 : vector<128xf32> to vector<1x128xf32>
    %36 = arith.addf %33, %35 : vector<1x128xf32>
    %c0_18 = arith.constant 0 : index
    %c0_19 = arith.constant 0 : index
    %37 = vector.load %arg4[%c0_18, %c0_19] : memref<1x128xf32, #tpu.memory_space<vmem>>, vector<1x128xf32>
    tpu.vector_store %arg4[%c0_18, %c0_19], %36 {strides = array<i32>} : memref<1x128xf32, #tpu.memory_space<vmem>>, vector<1x128xf32>,
    return
  }
  func.func @transform_0(%arg0: i32) -> (i32, i32) {
    %c0_i32 = arith.constant 0 : i32
    %c0_i32_0 = arith.constant 0 : i32
    return %arg0, %c0_i32 : i32, i32
  }
  func.func @transform_1(%arg0: i32) -> (i32, i32) {
    %c0_i32 = arith.constant 0 : i32
    %c0_i32_0 = arith.constant 0 : i32
    return %arg0, %c0_i32 : i32, i32
  }
  func.func @transform_2(%arg0: i32) -> (i32, i32) {
    %c0_i32 = arith.constant 0 : i32
    %c0_i32_0 = arith.constant 0 : i32
    %c0_i32_1 = arith.constant 0 : i32
    return %c0_i32, %c0_i32_0 : i32, i32
  }
  func.func @transform_3(%arg0: i32) -> (i32, i32) {
    %c0_i32 = arith.constant 0 : i32
    %c0_i32_0 = arith.constant 0 : i32
    %c0_i32_1 = arith.constant 0 : i32
    return %c0_i32, %c0_i32_0 : i32, i32
  }
}

</mosaic_0001>

<llo_original>
// kernel: focal_loss.1
$region0: #{focal_loss.1}
  #allocation0 [shape = 'u32[]', space=smem, size = 0x4, offset = 0x4, fixed_abs, tag = 'smem constant byte address 0x4 - core index']
  #allocation1 [shape = 'u32[72,128]{1,0:T(1,128)}', space=vmem, size = 0x9000, scoped, tag = 'internal scratch']
  %s0 = inlined_call_operand.vmem [shape: f32[16,128], index: 0, kind: input, shape index: {}]
  %s1 = inlined_call_operand.vmem [shape: f32[16,128], index: 1, kind: input, shape index: {}]
  %s2 = inlined_call_operand.vmem [shape: f32[1,128], index: 2, kind: output, shape index: {0}]
  %s3 = inlined_call_operand.vmem [shape: f32[1,128], index: 3, kind: output, shape index: {1}]
  %4 = xla_tuple %s2, %s3
  %s5 = sld [smem:[#allocation0]]
  $region30: #{focal_loss.1} parent=0
    _
  %s7 = ssub.s32 1, %s5
  %s8 = scalar_select 0, %s7, %s5
  // Predicated region
  $region2: #{focal_loss.1} parent=0 // pred_check
    _
  $region3: #{focal_loss.1} parent=0 // pred_check_branch
    %10 = sbr.rel (0) target = $region5
  $region4: #{focal_loss.1} parent=0 // pred_region
    _
  $region5: #{focal_loss.1} parent=0 // pred_fallthru
    _
  // Predicated region
  $region6: #{focal_loss.1} parent=0 // pred_check
    _
  $region7: #{focal_loss.1} parent=0 // pred_check_branch
    %12 = sbr.rel (0) target = $region9
  $region8: #{focal_loss.1} parent=0 // pred_region
    _
  $region9: #{focal_loss.1} parent=0 // pred_fallthru
    _
  %p13 = scmp.eq.s32.totalorder 0, 0
  // Predicated region
  $region10: #{focal_loss.1} parent=0 // pred_check
    %p14 = pneg %p13
  $region11: #{focal_loss.1} parent=0 // pred_check_branch
    %16 = sbr.rel (%p14) target = $region13
  $region12: #{focal_loss.1} parent=0 // pred_region
    %17 = vst [vmem:[%s2] sm:$0x1] 0.0
    %18 = vst [vmem:[%s3] sm:$0x1] 0.0
  $region13: #{focal_loss.1} parent=0 // pred_fallthru
    _
  %v19 = vld [vmem:[%s0] sm:$0xff]
  %v20 = vld [vmem:[%s0 + $0x8] sm:$0xff]
  %v21 = vld [vmem:[%s1] sm:$0xff]
  %v22 = vld [vmem:[%s1 + $0x8] sm:$0xff]
  %vm23 = vcmp.eq.f32.partialorder %v21, 1.0
  %vm24 = vcmp.eq.f32.partialorder %v22, 1.0
  %vm25 = vcmp.lt.f32.partialorder %v21, 1.0
  %vm26 = vcmp.lt.f32.partialorder %v22, 1.0
  %v27 = vsub.f32 1.0, %v19
  %v28 = vsub.f32 1.0, %v20
  %v29 = vsel %vm23, %v19, %v27
  %v30 = vsel %vm24, %v20, %v28
  %v31 = vlog2.pop %v29
  %v32 = vmul.f32 %v31, 0.6931472
  %v33 = vlog2.pop %v30
  %v34 = vmul.f32 %v33, 0.6931472
  %v35 = vsub.f32 1.0, %v21
  %v36 = vsub.f32 1.0, %v22
  %v37 = vmul.f32 %v35, %v35
  %v38 = vmul.f32 %v36, %v36
  %v39 = vmul.f32 %v27, %v27
  %v40 = vmul.f32 %v28, %v28
  %v41 = vmul.f32 %v19, %v19
  %v42 = vmul.f32 %v20, %v20
  %v43 = vmul.f32 %v37, %v37
  %v44 = vmul.f32 %v38, %v38
  %v45 = vmul.f32 %v41, %v43
  %v46 = vmul.f32 %v42, %v44
  %v47 = vsel %vm23, %v39, %v45
  %v48 = vsel %vm24, %v40, %v46
  %vm49 = vmor %vm23, %vm25
  %vm50 = vmor %vm24, %vm26
  %v51 = vmul.f32 %v32, %v47
  %v52 = vmul.f32 %v34, %v48
  %v53 = vsel %vm49, %v51, 0.0
  %v54 = vsel %vm50, %v52, 0.0
  %v55 = vsel %vm23, 1.0, 0.0
  %v56 = vsel %vm24, 1.0, 0.0
  %v57 = vld [vmem:[%s2] sm:$0x1]
  %v58 = vadd.f32 %v53, %v54
  %v59 = vrot.slane %v58, 4
  %v60 = vadd.f32 %v58, %v59
  %v61 = vrot.slane %v60, 2
  %v62 = vadd.f32 %v60, %v61
  %v63 = vrot.slane %v62, 1
  %v64 = vadd.f32 %v62, %v63
  %v65 = vadd.f32 %v57, %v64
  %66 = vst [vmem:[%s2] sm:$0x1] %v65
  %v67 = vld [vmem:[%s3] sm:$0x1]
  %v68 = vadd.f32 %v55, %v56
  %v69 = vrot.slane %v68, 4
  %v70 = vadd.f32 %v68, %v69
  %v71 = vrot.slane %v70, 2
  %v72 = vadd.f32 %v70, %v71
  %v73 = vrot.slane %v72, 1
  %v74 = vadd.f32 %v72, %v73
  %v75 = vadd.f32 %v67, %v74
  %76 = vst [vmem:[%s3] sm:$0x1] %v75
  // Predicated region
  $region14: #{focal_loss.1} parent=0 // pred_check
    _
  $region15: #{focal_loss.1} parent=0 // pred_check_branch
    %78 = sbr.rel (0) target = $region17
  $region16: #{focal_loss.1} parent=0 // pred_region
    _
  $region17: #{focal_loss.1} parent=0 // pred_fallthru
    _
  // Predicated region
  $region18: #{focal_loss.1} parent=0 // pred_check
    _
  $region19: #{focal_loss.1} parent=0 // pred_check_branch
    %80 = sbr.rel (0) target = $region21
  $region20: #{focal_loss.1} parent=0 // pred_region
    _
  $region21: #{focal_loss.1} parent=0 // pred_fallthru
    _
  // Predicated region
  $region22: #{focal_loss.1} parent=0 // pred_check
    _
  $region23: #{focal_loss.1} parent=0 // pred_check_branch
    %82 = sbr.rel (0) target = $region25
  $region24: #{focal_loss.1} parent=0 // pred_region
    _
  $region25: #{focal_loss.1} parent=0 // pred_fallthru
    _
  // Predicated region
  $region26: #{focal_loss.1} parent=0 // pred_check
    _
  $region27: #{focal_loss.1} parent=0 // pred_check_branch
    %84 = sbr.rel (0) target = $region29
  $region28: #{focal_loss.1} parent=0 // pred_region
    _
  $region29: #{focal_loss.1} parent=0 // pred_fallthru
    _

</llo_original>
